<compile_context>
chip_gen: v6e
topology: v6e:2x2x1
jax: 0.10.0
libtpu: 0.0.40
codegen_flags: <defaults>
</compile_context>

<pallas_src>
import functools

import jax
import jax.numpy as jnp
from jax.experimental import pallas as pl
from jax.experimental.pallas import tpu as pltpu


# ------------------------------ helpers ------------------------------------ #
def _round_up(x, m):
    return ((x + m - 1) // m) * m


def _row(ref, i):
    # Index tuple selecting rows [i:i+1] of the leading (channel) axis,
    # full slices on all remaining axes.
    return (slice(i, i + 1),) + (slice(None),) * (len(ref.shape) - 1)


# ----------------------------- Pallas kernels ------------------------------- #
def _invconv_vpu_kernel(w_ref, x_ref, o_ref, *, nc):
    """out[co, ...] = sum_ci W[co, ci] * x[ci, ...]  (channel mix on the VPU).

    w_ref: (nc, nc) float32 in SMEM (scalar reads, broadcast on the VPU).
    x_ref/o_ref: (nc, S, 128) lane-dense pixel tiles in VMEM.
    """
    # Hoist loads + f32 converts: C vloads/converts per tile, reused by all co.
    xs = [x_ref[_row(x_ref, ci)].astype(jnp.float32) for ci in range(nc)]
    for co in range(nc):
        acc = w_ref[co, 0] * xs[0]
        for ci in range(1, nc):
            acc = acc + w_ref[co, ci] * xs[ci]
        o_ref[_row(o_ref, co)] = acc.astype(o_ref.dtype)


def _invconv_mxu_kernel(w_ref, x_ref, o_ref):
    """MXU path for larger C: contract the channel axis with one small matmul.

    w_ref: (C, C) VMEM (same dtype as x for bf16 inputs -> bf16 MXU pass).
    x_ref/o_ref: (C, TP) VMEM tiles, TP a multiple of 128 (lane-dense stores).
    """
    o_ref[...] = jnp.dot(
        w_ref[...], x_ref[...], preferred_element_type=jnp.float32
    ).astype(o_ref.dtype)


# ------------------------------- wrapper ------------------------------------ #
def invconv1x1_nchw(x, w):
    """1x1 conv in native NCHW:  z[n,co,h,w] = sum_ci W[co,ci] * x[n,ci,h,w].

    x: (N, C, H, W) any float dtype, w: (C, C).  Returns (N, C, H, W), x.dtype.
    """
    N, C, H, W_sp = x.shape
    P = H * W_sp
    itemsize = jnp.dtype(x.dtype).itemsize
    w32 = w.astype(jnp.float32)

    # Lane-dense view: pad pixels up to a multiple of 128 (only if needed),
    # one wrapper-side pad instead of sublane-sparse/masked fallback tiles.
    Ppad = _round_up(P, 128)
    x3 = x.reshape(N, C, P)
    if Ppad != P:
        x3 = jnp.pad(x3, ((0, 0), (0, 0), (0, Ppad - P)))

    cost = pl.CostEstimate(
        flops=2 * C * C * N * P,
        transcendentals=0,
        bytes_accessed=int(2 * N * C * P * itemsize + C * C * 4),
    )
    cparams = pltpu.CompilerParams(
        dimension_semantics=("parallel", "parallel"),
        vmem_limit_bytes=32 << 20,
    )
    # ~3 MiB per pipeline buffer: in+out double-buffered ~= 12 MiB resident,
    # safe on v5e/v6e/v7x with the 32 MiB scoped limit above.
    budget = 3 << 20

    if C >= 8:
        # ---- MXU path (post-squeeze channel counts) ------------------------ #
        # The scalar-MAC loop goes VALU-bound around C~8-12; the MXU trivially
        # keeps up with HBM demand and gives f32 accumulation from bf16 inputs
        # for free.  Weight cast to x dtype only for sub-32-bit inputs.
        w_mx = w32 if x.dtype == jnp.float32 else w32.astype(x.dtype)
        tp_cap = max(128, (budget // (C * itemsize)) // 128 * 128)
        tp = min(Ppad, tp_cap)
        if N == 1 and tp >= Ppad and Ppad >= 256:
            tp = _round_up(-(-Ppad // 2), 128)  # >=2 blocks for v7x's 2 TCs
        out = pl.pallas_call(
            _invconv_mxu_kernel,
            out_shape=jax.ShapeDtypeStruct((N, C, Ppad), x.dtype),
            grid=(N, pl.cdiv(Ppad, tp)),
            in_specs=[
                pl.BlockSpec((C, C), lambda n, p: (0, 0)),
                pl.BlockSpec((None, C, tp), lambda n, p: (n, 0, p)),
            ],
            out_specs=pl.BlockSpec((None, C, tp), lambda n, p: (n, 0, p)),
            compiler_params=cparams,
            cost_estimate=cost,
        )(w_mx, x3)
    else:
        # ---- VPU path (small C, e.g. the pre-squeeze C=4 level) ------------ #
        rows = Ppad // 128
        sub = {1: 32, 2: 16, 4: 8}.get(itemsize, 8)  # native sublane tile rows
        x4 = x3.reshape(N, C, rows, 128)  # free, contiguous reshape
        cap = max(sub, (budget // (C * 128 * itemsize)) // sub * sub)
        if rows <= sub:
            s_blk = rows
        else:
            s_blk = min(cap, (rows // sub) * sub)
            if N == 1 and s_blk >= rows:
                # Keep >=2 grid blocks so both v7x TensorCores get work.
                s_blk = min(s_blk, _round_up(-(-rows // 2), sub))
        blk = (None, C, s_blk, 128)
        idx = lambda n, r: (n, 0, r, 0)
        out = pl.pallas_call(
            functools.partial(_invconv_vpu_kernel, nc=C),
            out_shape=jax.ShapeDtypeStruct((N, C, rows, 128), x.dtype),
            grid=(N, pl.cdiv(rows, s_blk)),
            in_specs=[
                pl.BlockSpec(memory_space=pltpu.MemorySpace.SMEM),
                pl.BlockSpec(blk, idx),
            ],
            out_specs=pl.BlockSpec(blk, idx),
            compiler_params=cparams,
            cost_estimate=cost,
        )(w32, x4)
        out = out.reshape(N, C, Ppad)

    if Ppad != P:
        out = out[:, :, :P]
    return out.reshape(N, C, H, W_sp)


# --------------------------- Module-level glue ------------------------------ #
class InvertibleConv1x1:
    """JAX/Pallas port of the PyTorch InvertibleConv1x1 module (LU=False)."""

    def __init__(self, num_channels, key):
        # Deterministic init: QR of a random normal matrix (orthogonal W).
        w0 = jax.random.normal(key, (num_channels, num_channels), jnp.float32)
        q, _ = jnp.linalg.qr(w0)
        self.weight = q.astype(jnp.float32)  # (C, C)
        self.num_channels = num_channels

    def _get_weight(self, x, reverse):
        # Tiny CxC scalar ops; computed on demand (no stale-cache hazard
        # if self.weight is updated during training).
        pixels = x.shape[2] * x.shape[3]
        dlogdet = jnp.linalg.slogdet(self.weight)[1] * pixels
        if not reverse:
            return self.weight, dlogdet
        # TODO(synk): PyTorch computes the inverse in float64; TPU default is
        # float32, so we invert in float32 here (looser reverse tolerance).
        return jnp.linalg.inv(self.weight), dlogdet

    def __call__(self, x, logdet=None, reverse=False):
        # x: (N, C, H, W) float (NCHW, matching the PyTorch module)
        w, dlogdet = self._get_weight(x, reverse)
        z = invconv1x1_nchw(x, w)
        if logdet is not None:
            logdet = logdet + dlogdet if not reverse else logdet - dlogdet
        return z, logdet


# --------------------------------- Demo ------------------------------------- #
if __name__ == "__main__":
    key = jax.random.PRNGKey(0)
    k_w, k_x, k_ld, k_w2, k_x2 = jax.random.split(key, 5)

    # --- Test 1: C=4 (VPU path), forward + reverse + logdet ---------------- #
    N, C, H, W = 2, 4, 16, 16
    x = jax.random.normal(k_x, (N, C, H, W), jnp.float32)
    logdet = jax.random.normal(k_ld, (N,), jnp.float32)

    mod = InvertibleConv1x1(C, k_w)

    z, new_logdet = mod(x, logdet=logdet, reverse=False)
    z = jax.block_until_ready(z)
    new_logdet = jax.block_until_ready(new_logdet)

    z_ref = jnp.einsum("nchw,oc->nohw", x, mod.weight)
    dlogdet_ref = jnp.linalg.slogdet(mod.weight)[1] * (H * W)
    logdet_ref = logdet + dlogdet_ref

    assert z.shape == (N, C, H, W) and z.dtype == jnp.float32
    assert jnp.allclose(z, z_ref, atol=1e-4, rtol=1e-4)
    assert jnp.allclose(new_logdet, logdet_ref, atol=1e-4, rtol=1e-4)

    x_rec, logdet_rec = mod(z, logdet=new_logdet, reverse=True)
    x_rec = jax.block_until_ready(x_rec)
    assert jnp.allclose(x_rec, x, atol=1e-3, rtol=1e-3)
    assert jnp.allclose(logdet_rec, logdet, atol=1e-3, rtol=1e-3)

    # --- Test 2: C=16 (MXU path) with H*W not a multiple of 128 (pad path) - #
    C2, H2, W2 = 16, 12, 12
    x2 = jax.random.normal(k_x2, (1, C2, H2, W2), jnp.float32)
    w2 = jax.random.normal(k_w2, (C2, C2), jnp.float32) * 0.3
    z2 = jax.block_until_ready(invconv1x1_nchw(x2, w2))
    z2_ref = jnp.einsum("nchw,oc->nohw", x2, w2)
    assert jnp.allclose(z2, z2_ref, atol=2e-4, rtol=2e-4)

    # --- Test 3: bf16 I/O path (f32 accumulation inside the kernel) -------- #
    x_bf = x.astype(jnp.bfloat16)
    z_bf = jax.block_until_ready(invconv1x1_nchw(x_bf, mod.weight))
    z_bf_ref = jnp.einsum("nchw,oc->nohw", x_bf.astype(jnp.float32), mod.weight)
    assert z_bf.dtype == jnp.bfloat16
    assert jnp.allclose(z_bf.astype(jnp.float32), z_bf_ref, atol=5e-2, rtol=5e-2)

    print("KERNEL_OK")
</pallas_src>

<mosaic_0001>
module attributes {stable_mosaic.version = 11 : i64} {
  func.func @_invconv_vpu_kernel(%arg0: i32, %arg1: i32, %arg2: memref<4x4xf32, #tpu.memory_space<smem>>, %arg3: memref<1x4x2x128xf32, #tpu.memory_space<vmem>>, %arg4: memref<1x4x2x128xf32, #tpu.memory_space<vmem>>) attributes {dimension_semantics = [#tpu.dimension_semantics<parallel>, #tpu.dimension_semantics<parallel>], iteration_bounds = array<i64: 2, 1>, scalar_prefetch = 0 : i64, scratch_operands = 0 : i64, tpu.core_type = #tpu.core_type<tc>, window_params = [{transform_indices = @transform_0, window_bounds = array<i64: 4, 4>}, {transform_indices = @transform_1, window_bounds = array<i64: 1, 4, 2, 128>}, {transform_indices = @transform_2, window_bounds = array<i64: 1, 4, 2, 128>}]} {
    %c0 = arith.constant 0 : index
    %c0_0 = arith.constant 0 : index
    %c0_1 = arith.constant 0 : index
    %c0_2 = arith.constant 0 : index
    %0 = vector.load %arg3[%c0, %c0_0, %c0_1, %c0_2] : memref<1x4x2x128xf32, #tpu.memory_space<vmem>>, vector<1x1x2x128xf32>
    %1 = vector.shape_cast %0 : vector<1x1x2x128xf32> to vector<1x2x128xf32>
    %c0_3 = arith.constant 0 : index
    %c1 = arith.constant 1 : index
    %c0_4 = arith.constant 0 : index
    %c0_5 = arith.constant 0 : index
    %2 = vector.load %arg3[%c0_3, %c1, %c0_4, %c0_5] : memref<1x4x2x128xf32, #tpu.memory_space<vmem>>, vector<1x1x2x128xf32>
    %3 = vector.shape_cast %2 : vector<1x1x2x128xf32> to vector<1x2x128xf32>
    %c0_6 = arith.constant 0 : index
    %c2 = arith.constant 2 : index
    %c0_7 = arith.constant 0 : index
    %c0_8 = arith.constant 0 : index
    %4 = vector.load %arg3[%c0_6, %c2, %c0_7, %c0_8] : memref<1x4x2x128xf32, #tpu.memory_space<vmem>>, vector<1x1x2x128xf32>
    %5 = vector.shape_cast %4 : vector<1x1x2x128xf32> to vector<1x2x128xf32>
    %c0_9 = arith.constant 0 : index
    %c3 = arith.constant 3 : index
    %c0_10 = arith.constant 0 : index
    %c0_11 = arith.constant 0 : index
    %6 = vector.load %arg3[%c0_9, %c3, %c0_10, %c0_11] : memref<1x4x2x128xf32, #tpu.memory_space<vmem>>, vector<1x1x2x128xf32>
    %7 = vector.shape_cast %6 : vector<1x1x2x128xf32> to vector<1x2x128xf32>
    %c0_12 = arith.constant 0 : index
    %c0_13 = arith.constant 0 : index
    %8 = memref.load %arg2[%c0_12, %c0_13] : memref<4x4xf32, #tpu.memory_space<smem>>
    %9 = vector.broadcast %8 : f32 to vector<1x2x128xf32>
    %10 = arith.mulf %9, %1 : vector<1x2x128xf32>
    %c0_14 = arith.constant 0 : index
    %c1_15 = arith.constant 1 : index
    %11 = memref.load %arg2[%c0_14, %c1_15] : memref<4x4xf32, #tpu.memory_space<smem>>
    %12 = vector.broadcast %11 : f32 to vector<1x2x128xf32>
    %13 = arith.mulf %12, %3 : vector<1x2x128xf32>
    %14 = arith.addf %10, %13 : vector<1x2x128xf32>
    %c0_16 = arith.constant 0 : index
    %c2_17 = arith.constant 2 : index
    %15 = memref.load %arg2[%c0_16, %c2_17] : memref<4x4xf32, #tpu.memory_space<smem>>
    %16 = vector.broadcast %15 : f32 to vector<1x2x128xf32>
    %17 = arith.mulf %16, %5 : vector<1x2x128xf32>
    %18 = arith.addf %14, %17 : vector<1x2x128xf32>
    %c0_18 = arith.constant 0 : index
    %c3_19 = arith.constant 3 : index
    %19 = memref.load %arg2[%c0_18, %c3_19] : memref<4x4xf32, #tpu.memory_space<smem>>
    %20 = vector.broadcast %19 : f32 to vector<1x2x128xf32>
    %21 = arith.mulf %20, %7 : vector<1x2x128xf32>
    %22 = arith.addf %18, %21 : vector<1x2x128xf32>
    %c0_20 = arith.constant 0 : index
    %c0_21 = arith.constant 0 : index
    %c0_22 = arith.constant 0 : index
    %c0_23 = arith.constant 0 : index
    %23 = vector.load %arg4[%c0_20, %c0_21, %c0_22, %c0_23] : memref<1x4x2x128xf32, #tpu.memory_space<vmem>>, vector<1x1x2x128xf32>
    %24 = vector.shape_cast %23 : vector<1x1x2x128xf32> to vector<1x2x128xf32>
    %25 = vector.shape_cast %22 : vector<1x2x128xf32> to vector<1x1x2x128xf32>
    tpu.vector_store %arg4[%c0_20, %c0_21, %c0_22, %c0_23], %25 {strides = array<i32>} : memref<1x4x2x128xf32, #tpu.memory_space<vmem>>, vector<1x1x2x128xf32>,
    %c1_24 = arith.constant 1 : index
    %c0_25 = arith.constant 0 : index
    %26 = memref.load %arg2[%c1_24, %c0_25] : memref<4x4xf32, #tpu.memory_space<smem>>
    %27 = vector.broadcast %26 : f32 to vector<1x2x128xf32>
    %28 = arith.mulf %27, %1 : vector<1x2x128xf32>
    %c1_26 = arith.constant 1 : index
    %c1_27 = arith.constant 1 : index
    %29 = memref.load %arg2[%c1_26, %c1_27] : memref<4x4xf32, #tpu.memory_space<smem>>
    %30 = vector.broadcast %29 : f32 to vector<1x2x128xf32>
    %31 = arith.mulf %30, %3 : vector<1x2x128xf32>
    %32 = arith.addf %28, %31 : vector<1x2x128xf32>
    %c1_28 = arith.constant 1 : index
    %c2_29 = arith.constant 2 : index
    %33 = memref.load %arg2[%c1_28, %c2_29] : memref<4x4xf32, #tpu.memory_space<smem>>
    %34 = vector.broadcast %33 : f32 to vector<1x2x128xf32>
    %35 = arith.mulf %34, %5 : vector<1x2x128xf32>
    %36 = arith.addf %32, %35 : vector<1x2x128xf32>
    %c1_30 = arith.constant 1 : index
    %c3_31 = arith.constant 3 : index
    %37 = memref.load %arg2[%c1_30, %c3_31] : memref<4x4xf32, #tpu.memory_space<smem>>
    %38 = vector.broadcast %37 : f32 to vector<1x2x128xf32>
    %39 = arith.mulf %38, %7 : vector<1x2x128xf32>
    %40 = arith.addf %36, %39 : vector<1x2x128xf32>
    %c0_32 = arith.constant 0 : index
    %c1_33 = arith.constant 1 : index
    %c0_34 = arith.constant 0 : index
    %c0_35 = arith.constant 0 : index
    %41 = vector.load %arg4[%c0_32, %c1_33, %c0_34, %c0_35] : memref<1x4x2x128xf32, #tpu.memory_space<vmem>>, vector<1x1x2x128xf32>
    %42 = vector.shape_cast %41 : vector<1x1x2x128xf32> to vector<1x2x128xf32>
    %43 = vector.shape_cast %40 : vector<1x2x128xf32> to vector<1x1x2x128xf32>
    tpu.vector_store %arg4[%c0_32, %c1_33, %c0_34, %c0_35], %43 {strides = array<i32>} : memref<1x4x2x128xf32, #tpu.memory_space<vmem>>, vector<1x1x2x128xf32>,
    %c2_36 = arith.constant 2 : index
    %c0_37 = arith.constant 0 : index
    %44 = memref.load %arg2[%c2_36, %c0_37] : memref<4x4xf32, #tpu.memory_space<smem>>
    %45 = vector.broadcast %44 : f32 to vector<1x2x128xf32>
    %46 = arith.mulf %45, %1 : vector<1x2x128xf32>
    %c2_38 = arith.constant 2 : index
    %c1_39 = arith.constant 1 : index
    %47 = memref.load %arg2[%c2_38, %c1_39] : memref<4x4xf32, #tpu.memory_space<smem>>
    %48 = vector.broadcast %47 : f32 to vector<1x2x128xf32>
    %49 = arith.mulf %48, %3 : vector<1x2x128xf32>
    %50 = arith.addf %46, %49 : vector<1x2x128xf32>
    %c2_40 = arith.constant 2 : index
    %c2_41 = arith.constant 2 : index
    %51 = memref.load %arg2[%c2_40, %c2_41] : memref<4x4xf32, #tpu.memory_space<smem>>
    %52 = vector.broadcast %51 : f32 to vector<1x2x128xf32>
    %53 = arith.mulf %52, %5 : vector<1x2x128xf32>
    %54 = arith.addf %50, %53 : vector<1x2x128xf32>
    %c2_42 = arith.constant 2 : index
    %c3_43 = arith.constant 3 : index
    %55 = memref.load %arg2[%c2_42, %c3_43] : memref<4x4xf32, #tpu.memory_space<smem>>
    %56 = vector.broadcast %55 : f32 to vector<1x2x128xf32>
    %57 = arith.mulf %56, %7 : vector<1x2x128xf32>
    %58 = arith.addf %54, %57 : vector<1x2x128xf32>
    %c0_44 = arith.constant 0 : index
    %c2_45 = arith.constant 2 : index
    %c0_46 = arith.constant 0 : index
    %c0_47 = arith.constant 0 : index
    %59 = vector.load %arg4[%c0_44, %c2_45, %c0_46, %c0_47] : memref<1x4x2x128xf32, #tpu.memory_space<vmem>>, vector<1x1x2x128xf32>
    %60 = vector.shape_cast %59 : vector<1x1x2x128xf32> to vector<1x2x128xf32>
    %61 = vector.shape_cast %58 : vector<1x2x128xf32> to vector<1x1x2x128xf32>
    tpu.vector_store %arg4[%c0_44, %c2_45, %c0_46, %c0_47], %61 {strides = array<i32>} : memref<1x4x2x128xf32, #tpu.memory_space<vmem>>, vector<1x1x2x128xf32>,
    %c3_48 = arith.constant 3 : index
    %c0_49 = arith.constant 0 : index
    %62 = memref.load %arg2[%c3_48, %c0_49] : memref<4x4xf32, #tpu.memory_space<smem>>
    %63 = vector.broadcast %62 : f32 to vector<1x2x128xf32>
    %64 = arith.mulf %63, %1 : vector<1x2x128xf32>
    %c3_50 = arith.constant 3 : index
    %c1_51 = arith.constant 1 : index
    %65 = memref.load %arg2[%c3_50, %c1_51] : memref<4x4xf32, #tpu.memory_space<smem>>
    %66 = vector.broadcast %65 : f32 to vector<1x2x128xf32>
    %67 = arith.mulf %66, %3 : vector<1x2x128xf32>
    %68 = arith.addf %64, %67 : vector<1x2x128xf32>
    %c3_52 = arith.constant 3 : index
    %c2_53 = arith.constant 2 : index
    %69 = memref.load %arg2[%c3_52, %c2_53] : memref<4x4xf32, #tpu.memory_space<smem>>
    %70 = vector.broadcast %69 : f32 to vector<1x2x128xf32>
    %71 = arith.mulf %70, %5 : vector<1x2x128xf32>
    %72 = arith.addf %68, %71 : vector<1x2x128xf32>
    %c3_54 = arith.constant 3 : index
    %c3_55 = arith.constant 3 : index
    %73 = memref.load %arg2[%c3_54, %c3_55] : memref<4x4xf32, #tpu.memory_space<smem>>
    %74 = vector.broadcast %73 : f32 to vector<1x2x128xf32>
    %75 = arith.mulf %74, %7 : vector<1x2x128xf32>
    %76 = arith.addf %72, %75 : vector<1x2x128xf32>
    %c0_56 = arith.constant 0 : index
    %c3_57 = arith.constant 3 : index
    %c0_58 = arith.constant 0 : index
    %c0_59 = arith.constant 0 : index
    %77 = vector.load %arg4[%c0_56, %c3_57, %c0_58, %c0_59] : memref<1x4x2x128xf32, #tpu.memory_space<vmem>>, vector<1x1x2x128xf32>
    %78 = vector.shape_cast %77 : vector<1x1x2x128xf32> to vector<1x2x128xf32>
    %79 = vector.shape_cast %76 : vector<1x2x128xf32> to vector<1x1x2x128xf32>
    tpu.vector_store %arg4[%c0_56, %c3_57, %c0_58, %c0_59], %79 {strides = array<i32>} : memref<1x4x2x128xf32, #tpu.memory_space<vmem>>, vector<1x1x2x128xf32>,
    return
  }
  func.func @transform_0(%arg0: i32, %arg1: i32) -> (i32, i32) {
    %c0_i32 = arith.constant 0 : i32
    %c0_i32_0 = arith.constant 0 : i32
    %c0_i32_1 = arith.constant 0 : i32
    return %c0_i32, %c0_i32_0 : i32, i32
  }
  func.func @transform_1(%arg0: i32, %arg1: i32) -> (i32, i32, i32, i32) {
    %c0_i32 = arith.constant 0 : i32
    %c0_i32_0 = arith.constant 0 : i32
    %c0_i32_1 = arith.constant 0 : i32
    return %arg0, %c0_i32, %arg1, %c0_i32_0 : i32, i32, i32, i32
  }
  func.func @transform_2(%arg0: i32, %arg1: i32) -> (i32, i32, i32, i32) {
    %c0_i32 = arith.constant 0 : i32
    %c0_i32_0 = arith.constant 0 : i32
    %c0_i32_1 = arith.constant 0 : i32
    return %arg0, %c0_i32, %arg1, %c0_i32_0 : i32, i32, i32, i32
  }
}

</mosaic_0001>

<llo_original>
// kernel: tpu_custom_call.1
$region0: #{tpu_custom_call.1}
  #allocation0 [shape = 'u32[]', space=smem, size = 0x4, offset = 0x4, fixed_abs, tag = 'smem constant byte address 0x4 - core index']
  #allocation1 [shape = 'u32[144,128]{1,0:T(1,128)}', space=vmem, size = 0x12000, scoped, tag = 'internal scratch']
  %s0 = inlined_call_operand.hbm [shape: f32[4,4], index: 0, kind: input, shape index: {}]
  %s1 = inlined_call_operand.hbm [shape: f32[2,4,2,128], index: 1, kind: input, shape index: {}]
  %s2 = inlined_call_operand.hbm [shape: f32[2,4,2,128], index: 2, kind: output, shape index: {}]
  %s3 = sld [smem:[#allocation0]]
  $region49: #{tpu_custom_call.1} parent=0
    _
  %s5 = ssub.s32 1, %s3
  %s6 = scalar_select 0, %s5, %s3
  $region1: #{tpu_custom_call.1} parent=0
    #allocation2 [shape = 'u8[2048]{0}', space=smem, size = 0x800, scoped, tag = 'input window, operand 0, single buffered']
    #allocation3 [shape = 's32[2]{0}', space=sflag, size = 0x8, scoped, tag = 'scoped memory for tpu_custom_call.1']
    #allocation4 [shape = 's32[2]{0}', space=sflag, size = 0x8, scoped, tag = 'scoped memory for tpu_custom_call.1']
    #allocation5 [shape = 's32[2]{0}', space=sflag, size = 0x8, scoped, tag = 'scoped memory for tpu_custom_call.1']
    #allocation6 [shape = 'u8[8192]{0}', space=vmem, size = 0x2000, scoped, tag = 'input window, operand 1']
    #allocation7 [shape = 'u8[8192]{0}', space=vmem, size = 0x2000, scoped, tag = 'output window, operand 0']
    %7 = vsyncpa [#allocation5], 0
    %8 = vsyncpa [#allocation3], 0
    %s9 = scalar_lea.sflag [#allocation3], 1
    %10 = vsyncpa %s9, 0
    %11 = vsyncpa [#allocation4], 0
    %s12 = scalar_lea.sflag [#allocation4], 1
    %13 = vsyncpa %s12, 0
    loop: start=0, step=1, limit=4
    $region2: #{tpu_custom_call.1} parent=1 // loop_pre_header
      _
    $region3: #{tpu_custom_call.1} parent=1 // loop_header
      %s15 = sphi 0, %s19
      %p16 = scmp.ge.s32.totalorder %s15, 4
      %s22 = sphi 0, %s34
      %s23 = sphi 0, %s30
      %s24 = sphi 0, %s22
      %s25 = sphi 0, %s23
      %s26 = sphi 0, %s24
      %s27 = sphi 0, %s25
      %s35 = sphi 0, %s35
      %s37 = sphi 0, %s35
      %s38 = sphi 0, %s37
      %s52 = sphi 0, %s38
      %s60 = sphi 0, %s62
      %s63 = sphi 0, %s60
      %s64 = sphi 0, %s63
      %s80 = sphi 0, %s64
      %s88 = sphi 0, %s90
      %s91 = sphi 0, %s88
      %s92 = sphi 0, %s91
      %s108 = sphi 0, %s92
    $region4: #{tpu_custom_call.1} parent=1 // loop_header_branch
      %18 = sbr.rel (%p16) target = $region8
    $region5: #{tpu_custom_call.1} parent=1 // loop_body
      %s20 = ssub.s32 %s15, 1
      %s21 = ssub.s32 %s15, 2
      %s28 = sadd.s32 1, %s23
      %p29 = scmp.ge.s32.totalorder %s28, 1
      %s30 = scalar_select %p29, 0, %s28
      %s31 = sadd.s32 1, %s22
      %s32 = scalar_select %p29, %s31, %s22
      %p33 = scmp.ge.s32.totalorder %s32, 2
      %s34 = scalar_select %p33, 0, %s32
      %s36 = sadd.s32 %s35, 1
      %p39 = scmp.eq.s32.totalorder %s15, 1
      %p40 = scmp.ne.s32.totalorder %s35, %s37
      %p41 = scmp.eq.s32.totalorder %s15, 0
      %p42 = por %p40, %p41
      %p43 = scmp.ne.s32.totalorder %s35, %s37
      %p44 = scmp.eq.s32.totalorder %s20, 1
      %p45 = por %p43, %p44
      %p46 = scmp.ne.s32.totalorder %s37, %s38
      %p47 = scmp.eq.s32.totalorder %s20, 0
      %p48 = por %p46, %p47
      %p49 = scmp.ne.s32.totalorder %s37, %s38
      %p50 = scmp.eq.s32.totalorder %s21, 1
      %p51 = por %p49, %p50
      %p53 = scmp.ne.s32.totalorder %s38, %s52
      %p54 = scmp.eq.s32.totalorder %s21, 0
      %p55 = por %p53, %p54
      %s56 = ssub.s32 %s22, %s34
      %s57 = ssub.s32 %s23, %s30
      %s58 = sor.u32 %s56, %s57
      %p59 = scmp.eq.s32.totalorder %s58, 0
      %s61 = sadd.s32 %s60, 1
      %s62 = scalar_select %p59, %s60, %s61
      %p65 = pneg %p59
      %p66 = scmp.eq.s32.totalorder %s15, 1
      %p67 = por %p65, %p66
      %p68 = scmp.ne.s32.totalorder %s60, %s63
      %p69 = scmp.eq.s32.totalorder %s15, 0
      %p70 = por %p68, %p69
      %p71 = scmp.ne.s32.totalorder %s60, %s63
      %p72 = scmp.eq.s32.totalorder %s20, 1
      %p73 = por %p71, %p72
      %p74 = scmp.ne.s32.totalorder %s63, %s64
      %p75 = scmp.eq.s32.totalorder %s20, 0
      %p76 = por %p74, %p75
      %p77 = scmp.ne.s32.totalorder %s63, %s64
      %p78 = scmp.eq.s32.totalorder %s21, 1
      %p79 = por %p77, %p78
      %p81 = scmp.ne.s32.totalorder %s64, %s80
      %p82 = scmp.eq.s32.totalorder %s21, 0
      %p83 = por %p81, %p82
      %s84 = ssub.s32 %s22, %s34
      %s85 = ssub.s32 %s23, %s30
      %s86 = sor.u32 %s84, %s85
      %p87 = scmp.eq.s32.totalorder %s86, 0
      %s89 = sadd.s32 %s88, 1
      %s90 = scalar_select %p87, %s88, %s89
      %p93 = pneg %p87
      %p94 = scmp.eq.s32.totalorder %s15, 1
      %p95 = por %p93, %p94
      %p96 = scmp.ne.s32.totalorder %s88, %s91
      %p97 = scmp.eq.s32.totalorder %s15, 0
      %p98 = por %p96, %p97
      %p99 = scmp.ne.s32.totalorder %s88, %s91
      %p100 = scmp.eq.s32.totalorder %s20, 1
      %p101 = por %p99, %p100
      %p102 = scmp.ne.s32.totalorder %s91, %s92
      %p103 = scmp.eq.s32.totalorder %s20, 0
      %p104 = por %p102, %p103
      %p105 = scmp.ne.s32.totalorder %s91, %s92
      %p106 = scmp.eq.s32.totalorder %s21, 1
      %p107 = por %p105, %p106
      %p109 = scmp.ne.s32.totalorder %s92, %s108
      %p110 = scmp.eq.s32.totalorder %s21, 0
      %p111 = por %p109, %p110
      %p112 = scmp.le.s32.totalorder 1, %s15
      %p113 = scmp.lt.s32.totalorder %s15, 3
      %p114 = pnand %p112, %p113
      %p115 = pneg %p114
      // Predicated region
      $region9: #{tpu_custom_call.1} parent=5 // pred_check
        _
      $region10: #{tpu_custom_call.1} parent=5 // pred_check_branch
        %117 = sbr.rel (%p114) target = $region12
      $region11: #{tpu_custom_call.1} parent=5 // pred_region
        %s118 = ssub.s32 %s15, 1
        // Predicated region
        $region13: #{tpu_custom_call.1} parent=11 // pred_check
          %p119 = pneg %p48
        $region14: #{tpu_custom_call.1} parent=11 // pred_check_branch
          %121 = sbr.rel (%p119) target = $region16
        $region15: #{tpu_custom_call.1} parent=11 // pred_region
          %s123 = ssub.s32 64, 64
          %124 = vsyncadd [#allocation5], %s123
          %127 = dma.hbm_to_smem %s0, 64, [#allocation2], [#allocation5]
        $region16: #{tpu_custom_call.1} parent=11 // pred_fallthru
          _
      $region12: #{tpu_custom_call.1} parent=5 // pred_fallthru
        _
      %p128 = scmp.lt.s32.totalorder %s15, 2
      // Predicated region
      $region17: #{tpu_custom_call.1} parent=5 // pred_check
        %p129 = pneg %p128
      $region18: #{tpu_custom_call.1} parent=5 // pred_check_branch
        %131 = sbr.rel (%p129) target = $region20
      $region19: #{tpu_custom_call.1} parent=5 // pred_region
        // Predicated region
        $region21: #{tpu_custom_call.1} parent=19 // pred_check
          %p132 = pneg %p70
        $region22: #{tpu_custom_call.1} parent=19 // pred_check_branch
          %134 = sbr.rel (%p132) target = $region24
        $region23: #{tpu_custom_call.1} parent=19 // pred_region
          %s135 = sand.u32 %s60, 1
          %s136 = scalar_lea.sflag [#allocation3], %s135
          %s137 = sand.u32 %s60, 1
          %s138 = smul.addr %s137, 8
          %s139 = scalar_lea.vmem [#allocation6], %s138
          %s141 = ssub.s32 128, 128
          %142 = vsyncadd %s136, %s141
          %s143 = smul.addr %s22, 4
          %s144 = sadd.s32 %s23, %s143
          %s145 = smul.addr %s144, 32
          %s146 = scalar_lea.hbm %s1, %s145
          %s147 = sshll.u32 %s139, 4
          %s148 = int_to_ptr.vmem [resolvable:$true] %s147
          %153 = dma.hbm_to_vmem [thread:$0]  %s146, 128, %s148, %s136, 32, 32, 2
        $region24: #{tpu_custom_call.1} parent=19 // pred_fallthru
          _
      $region20: #{tpu_custom_call.1} parent=5 // pred_fallthru
        _
      %p154 = scmp.le.s32.totalorder 1, %s15
      %p155 = scmp.lt.s32.totalorder %s15, 3
      %p156 = pnand %p154, %p155
      %p157 = pneg %p156
      // Predicated region
      $region25: #{tpu_custom_call.1} parent=5 // pred_check
        _
      $region26: #{tpu_custom_call.1} parent=5 // pred_check_branch
        %159 = sbr.rel (%p156) target = $region28
      $region27: #{tpu_custom_call.1} parent=5 // pred_region
        %s160 = ssub.s32 %s15, 1
        // Predicated region
        $region29: #{tpu_custom_call.1} parent=27 // pred_check
          %p161 = pneg %p48
        $region30: #{tpu_custom_call.1} parent=27 // pred_check_branch
          %163 = sbr.rel (%p161) target = $region32
        $region31: #{tpu_custom_call.1} parent=27 // pred_region
          %164 = dma.done [#allocation5], 64
        $region32: #{tpu_custom_call.1} parent=27 // pred_fallthru
          _
        %s165 = sand.u32 %s63, 1
        %s166 = scalar_lea.sflag [#allocation3], %s165
        %s167 = sand.u32 %s63, 1
        %s168 = smul.addr %s167, 8
        %s169 = scalar_lea.vmem [#allocation6], %s168
        // Predicated region
        $region33: #{tpu_custom_call.1} parent=27 // pred_check
          %p170 = pneg %p76
        $region34: #{tpu_custom_call.1} parent=27 // pred_check_branch
          %172 = sbr.rel (%p170) target = $region36
        $region35: #{tpu_custom_call.1} parent=27 // pred_region
          %173 = dma.done %s166, 128
        $region36: #{tpu_custom_call.1} parent=27 // pred_fallthru
          _
        %174 = sfence
        %p175 = pneg %p48
        %p176 = pneg %p45
        %s177 = sand.u32 %s63, 1
        %s178 = scalar_lea.sflag [#allocation3], %s177
        %s179 = sand.u32 %s63, 1
        %s180 = smul.addr %s179, 8
        %s181 = scalar_lea.vmem [#allocation6], %s180
        %p182 = pneg %p76
        %p183 = pneg %p73
        %p184 = pneg %p104
        %p185 = pneg %p101
        %s186 = sand.u32 %s91, 1
        %s187 = scalar_lea.sflag [#allocation4], %s186
        %s188 = sand.u32 %s91, 1
        %s189 = smul.addr %s188, 8
        %s190 = scalar_lea.vmem [#allocation7], %s189
        %v191 = vld [vmem:[%s169] sm:$0x3]
        %s192 = scalar_lea.vmem %s169, 2 [#allocation6]
        %v193 = vld [vmem:[%s192] sm:$0x3]
        %s194 = scalar_lea.vmem %s169, 4 [#allocation6]
        %v195 = vld [vmem:[%s194] sm:$0x3]
        %s196 = scalar_lea.vmem %s169, 6 [#allocation6]
        %v197 = vld [vmem:[%s196] sm:$0x3]
        %s198 = sld [smem:[#allocation2]]
        %v199 = vstv %s198
        %v200 = vmul.f32 %v199, %v191
        %s201 = sld [smem:[#allocation2 + $0x1]]
        %v202 = vstv %s201
        %v203 = vmul.f32 %v202, %v193
        %v204 = vadd.f32 %v200, %v203
        %s205 = sld [smem:[#allocation2 + $0x2]]
        %v206 = vstv %s205
        %v207 = vmul.f32 %v206, %v195
        %v208 = vadd.f32 %v204, %v207
        %s209 = sld [smem:[#allocation2 + $0x3]]
        %v210 = vstv %s209
        %v211 = vmul.f32 %v210, %v197
        %v212 = vadd.f32 %v208, %v211
        %213 = vst [vmem:[%s190] sm:$0x3] %v212
        %s214 = sld [smem:[#allocation2 + $0x80]]
        %v215 = vstv %s214
        %v216 = vmul.f32 %v215, %v191
        %s217 = sld [smem:[#allocation2 + $0x81]]
        %v218 = vstv %s217
        %v219 = vmul.f32 %v218, %v193
        %v220 = vadd.f32 %v216, %v219
        %s221 = sld [smem:[#allocation2 + $0x82]]
        %v222 = vstv %s221
        %v223 = vmul.f32 %v222, %v195
        %v224 = vadd.f32 %v220, %v223
        %s225 = sld [smem:[#allocation2 + $0x83]]
        %v226 = vstv %s225
        %v227 = vmul.f32 %v226, %v197
        %v228 = vadd.f32 %v224, %v227
        %s229 = scalar_lea.vmem %s190, 2 [#allocation7]
        %230 = vst [vmem:[%s229] sm:$0x3] %v228
        %s231 = sld [smem:[#allocation2 + $0x100]]
        %v232 = vstv %s231
        %v233 = vmul.f32 %v232, %v191
        %s234 = sld [smem:[#allocation2 + $0x101]]
        %v235 = vstv %s234
        %v236 = vmul.f32 %v235, %v193
        %v237 = vadd.f32 %v233, %v236
        %s238 = sld [smem:[#allocation2 + $0x102]]
        %v239 = vstv %s238
        %v240 = vmul.f32 %v239, %v195
        %v241 = vadd.f32 %v237, %v240
        %s242 = sld [smem:[#allocation2 + $0x103]]
        %v243 = vstv %s242
        %v244 = vmul.f32 %v243, %v197
        %v245 = vadd.f32 %v241, %v244
        %s246 = scalar_lea.vmem %s190, 4 [#allocation7]
        %247 = vst [vmem:[%s246] sm:$0x3] %v245
        %s248 = sld [smem:[#allocation2 + $0x180]]
        %v249 = vstv %s248
        %v250 = vmul.f32 %v249, %v191
        %s251 = sld [smem:[#allocation2 + $0x181]]
        %v252 = vstv %s251
        %v253 = vmul.f32 %v252, %v193
        %v254 = vadd.f32 %v250, %v253
        %s255 = sld [smem:[#allocation2 + $0x182]]
        %v256 = vstv %s255
        %v257 = vmul.f32 %v256, %v195
        %v258 = vadd.f32 %v254, %v257
        %s259 = sld [smem:[#allocation2 + $0x183]]
        %v260 = vstv %s259
        %v261 = vmul.f32 %v260, %v197
        %v262 = vadd.f32 %v258, %v261
        %s263 = scalar_lea.vmem %s190, 6 [#allocation7]
        %264 = vst [vmem:[%s263] sm:$0x3] %v262
        %s265 = sand.u32 %s91, 1
        %s266 = scalar_lea.sflag [#allocation4], %s265
        %s267 = sand.u32 %s91, 1
        %s268 = smul.addr %s267, 8
        %s269 = scalar_lea.vmem [#allocation7], %s268
        // Predicated region
        $region37: #{tpu_custom_call.1} parent=27 // pred_check
          %p270 = pneg %p101
        $region38: #{tpu_custom_call.1} parent=27 // pred_check_branch
          %272 = sbr.rel (%p270) target = $region40
        $region39: #{tpu_custom_call.1} parent=27 // pred_region
          %s274 = ssub.s32 128, 128
          %275 = vsyncadd %s266, %s274
          %s276 = smul.addr %s24, 4
          %s277 = sadd.s32 %s25, %s276
          %s278 = smul.addr %s277, 32
          %s279 = scalar_lea.hbm %s2, %s278
          %s280 = sshll.u32 %s269, 4
          %s281 = int_to_ptr.vmem [resolvable:$true] %s280
          %286 = dma.vmem_to_hbm [thread:$0]  %s281, 128, %s279, %s266, 32, 32, 2
        $region40: #{tpu_custom_call.1} parent=27 // pred_fallthru
          _
      $region28: #{tpu_custom_call.1} parent=5 // pred_fallthru
        _
      %p287 = scmp.le.s32.totalorder 2, %s15
      // Predicated region
      $region41: #{tpu_custom_call.1} parent=5 // pred_check
        %p288 = pneg %p287
      $region42: #{tpu_custom_call.1} parent=5 // pred_check_branch
        %290 = sbr.rel (%p288) target = $region44
      $region43: #{tpu_custom_call.1} parent=5 // pred_region
        %s291 = ssub.s32 %s15, 2
        // Predicated region
        $region45: #{tpu_custom_call.1} parent=43 // pred_check
          %p292 = pneg %p107
        $region46: #{tpu_custom_call.1} parent=43 // pred_check_branch
          %294 = sbr.rel (%p292) target = $region48
        $region47: #{tpu_custom_call.1} parent=43 // pred_region
          %s295 = sand.u32 %s92, 1
          %s296 = scalar_lea.sflag [#allocation4], %s295
          %s297 = sand.u32 %s92, 1
          %s298 = smul.addr %s297, 8
          %s299 = scalar_lea.vmem [#allocation7], %s298
          %300 = dma.done %s296, 128
        $region48: #{tpu_custom_call.1} parent=43 // pred_fallthru
          _
      $region44: #{tpu_custom_call.1} parent=5 // pred_fallthru
        _
    $region6: #{tpu_custom_call.1} parent=1 // loop_footer
      %s19 = sadd.s32 1, %s15
    $region7: #{tpu_custom_call.1} parent=1 // loop_footer_branch
      %14 = sbr.rel target = $region3
    $region8: #{tpu_custom_call.1} parent=1 // loop_exit
      _
    %301 = vsyncpa [#allocation3], 1
    %s302 = scalar_lea.sflag [#allocation3], 1
    %303 = vsyncpa %s302, 1
    %304 = vsyncpa [#allocation4], 1
    %s305 = scalar_lea.sflag [#allocation4], 1
    %306 = vsyncpa %s305, 1
    %307 = vsyncpa [#allocation5], 1
    %s308 = scalar_lea.sflag [#allocation5], 1
    %309 = vsyncpa %s308, 1

</llo_original>
